<compile_context>
chip_gen: v6e
topology: v6e:2x2x1
jax: 0.10.0
libtpu: 0.0.40
codegen_flags: <defaults>
</compile_context>

<pallas_src>
import functools

import jax
import jax.numpy as jnp
from jax.experimental import pallas as pl
from jax.experimental.pallas import tpu as pltpu


def _round_up(x, m):
    return (x + m - 1) // m * m


def _cdiv(a, b):
    return -(-a // b)


def _neg_sum_kernel(a_ref, neg_ref, out_ref, acc_ref, *,
                    inv_temp, n_total, block_n, chunk_n, num_chunks,
                    steps, needs_mask, use_mxu):
    """Accumulates sum_n exp(<anchor_b, negative_n_b> / temp) for one B tile.

    a_ref:   (block_b, D)            anchor tile (resident across the N sweep)
    neg_ref: (block_n, block_b, D)   one slab of negatives
    out_ref: (1, block_b, 1) f32     partial negative-sum for this (jp, ib)
    acc_ref: (block_b, 1)   f32      running accumulator (VMEM scratch)
    """
    jp = pl.program_id(1)
    k = pl.program_id(2)

    @pl.when(k == 0)
    def _():
        acc_ref[...] = jnp.zeros_like(acc_ref)

    a = a_ref[...]                                   # (TB, D), input dtype
    tb, d = a.shape
    cdtype = jnp.promote_types(a_ref.dtype, neg_ref.dtype)

    # Constant reduction vector for the MXU D-reduce; hoisted out of the chunk
    # loop (JAX does not CSE broadcasts inside loops).
    ones_col = jnp.ones((d, 1), dtype=cdtype)
    mxu_precision = (jax.lax.Precision.HIGHEST
                     if cdtype == jnp.float32 else None)

    # Logical (unclamped) block index along N.  The BlockSpec index_map clamps
    # the DMA to an in-range slab; rows beyond N are masked to 0 below.
    blk = jp * steps + k

    def sweep(masked):
        @pl.loop(0, num_chunks)
        def _(c):
            start = pl.multiple_of(c * chunk_n, chunk_n)
            chunk = neg_ref[pl.ds(start, chunk_n), :, :]      # (c_n, TB, D)
            # Products in the input dtype (bf16 VALU on v6e/v7x); the
            # reduction itself accumulates in f32.
            prod = a[None, :, :] * chunk
            if use_mxu:
                # D-reduction on the (otherwise idle) MXU via a ones-matmul,
                # freeing the XLU/vex slot for the streaming loop.
                s = jnp.dot(prod.reshape(chunk_n * tb, d), ones_col,
                            precision=mxu_precision,
                            preferred_element_type=jnp.float32)
                e = jnp.exp(s * inv_temp).reshape(chunk_n, tb, 1)
            else:
                # Fallback when block_b is not sublane-tile aligned.
                s = jnp.sum(prod.astype(jnp.float32), axis=-1, keepdims=True)
                e = jnp.exp(s * inv_temp)                     # (c_n, TB, 1)
            if masked:
                # Post-exp masking: padded / out-of-range rows contribute 0.
                row = jax.lax.broadcasted_iota(jnp.int32, e.shape, 0)
                gidx = blk * block_n + c * chunk_n + row
                e = jnp.where(gidx < n_total, e, 0.0)
            acc_ref[...] += jnp.sum(e, axis=0)                # (TB, 1) f32

    if needs_mask:
        # Only blocks that touch the ragged tail (or clamped duplicate blocks
        # from the parallel N split) pay for the mask arithmetic.
        unclean = (blk + 1) * block_n > n_total

        @pl.when(unclean)
        def _():
            sweep(True)

        @pl.when(jnp.logical_not(unclean))
        def _():
            sweep(False)
    else:
        sweep(False)

    @pl.when(k == steps - 1)
    def _():
        out_ref[...] = jnp.expand_dims(acc_ref[...], 0)       # (1, TB, 1)


def info_nce_loss(anchor, positive, negative, temp=0.5, *,
                  block_b=None, block_n=None, chunk_n=None):
    """anchor, positive: (B, D); negative: (N, B, D). Returns scalar f32 loss.

    Inputs may be float32 or bfloat16; accumulation is always float32.
    """
    B, D = anchor.shape
    N = negative.shape[0]
    assert positive.shape == (B, D)
    assert negative.shape == (N, B, D)

    itemsize = jnp.dtype(negative.dtype).itemsize
    sub_mult = 16 if itemsize == 2 else 8          # packed sublane tile height

    # ---- B tiling ("parallel" axis) -----------------------------------------
    if block_b is None:
        block_b = B
        for cand in (256, 128, 64, 32, 16, 8):     # modest tiles, >=2 when possible
            if cand % sub_mult == 0 and B % cand == 0 and (B // cand) >= 2:
                block_b = cand
                break
    assert B % block_b == 0, "block_b must divide B"
    assert block_b == B or block_b % sub_mult == 0, \
        "block_b must be B or a multiple of the sublane tile height"
    num_b = B // block_b

    # ---- per-generation VMEM budget -----------------------------------------
    try:
        vmem_cap = int(pltpu.get_tpu_info().vmem_capacity_bytes)
    except Exception:
        vmem_cap = 64 * 1024 * 1024                # v7x-safe fallback
    if vmem_cap >= 100 * 1024 * 1024:              # v5e / v6e: 128 MiB physical
        slab_cap = 32 * 1024 * 1024
        limit_cap = 100 * 1024 * 1024
    else:                                          # v7x (64 MiB) or unknown
        slab_cap = 8 * 1024 * 1024
        limit_cap = 48 * 1024 * 1024

    lane_d = _round_up(D, 128)
    sub_b = _round_up(block_b, sub_mult)
    per_n_bytes = sub_b * lane_d * itemsize        # layout-true (bf16: 2 B/elem)
    # working bytes per streamed row inside a chunk (product + lane-padded f32
    # score/exp columns)
    per_n_work = sub_b * lane_d * max(4, itemsize) + 2 * sub_b * 128 * 4

    # ---- N blocking: slab = num_chunks * chunk_n rows ------------------------
    if chunk_n is None:
        chunk_n = max(1, min(N, (1 * 1024 * 1024) // per_n_work))
    chunk_n = max(1, min(int(chunk_n), N))
    if block_n is None:
        num_chunks = max(1, min(slab_cap // max(1, chunk_n * per_n_bytes),
                                N // chunk_n))
        block_n = chunk_n * num_chunks
    else:
        block_n = max(1, min(int(block_n), N))
        chunk_n = min(chunk_n, block_n)
        if block_n % chunk_n != 0:
            chunk_n = block_n
        num_chunks = block_n // chunk_n

    nblocks = _cdiv(N, block_n)

    # ---- dual-TC occupancy: if B could not be split, split the N sweep -------
    n_par = 2 if (num_b == 1 and nblocks >= 2) else 1
    steps = _cdiv(nblocks, n_par)
    needs_mask = (n_par * steps * block_n != N)

    use_mxu = (block_b % sub_mult == 0)

    # ---- VMEM limit (double-buffered slabs + bounded chunk temporaries) ------
    needed = (2 * block_n * per_n_bytes            # negative slabs x2
              + 2 * sub_b * lane_d * itemsize      # anchor x2 buffers
              + 2 * chunk_n * per_n_work           # chunk intermediates (x2 margin)
              + 2 * 1024 * 1024)                   # acc/out/misc
    vmem_limit = int(min(limit_cap,
                         max(32 * 1024 * 1024, needed + (4 << 20))))

    kernel = functools.partial(
        _neg_sum_kernel,
        inv_temp=float(1.0 / temp),
        n_total=N,
        block_n=block_n,
        chunk_n=chunk_n,
        num_chunks=num_chunks,
        steps=steps,
        needs_mask=needs_mask,
        use_mxu=use_mxu,
    )

    last_blk = nblocks - 1

    def _neg_index(ib, jp, k):
        # Clamp so every grid step DMAs an in-range slab; logically empty or
        # partial blocks are zeroed by the in-kernel post-exp mask.
        blk = jp * steps + k
        return (jnp.minimum(blk, last_blk), ib, 0)

    partial = pl.pallas_call(
        kernel,
        out_shape=jax.ShapeDtypeStruct((n_par, B, 1), jnp.float32),
        grid_spec=pltpu.PrefetchScalarGridSpec(
            num_scalar_prefetch=0,
            grid=(num_b, n_par, steps),
            in_specs=[
                # anchor tile: resident across the whole N sweep of its B tile
                pl.BlockSpec((block_b, D), lambda ib, jp, k: (ib, 0)),
                # negatives: (block_n, block_b, D) slab per grid step
                pl.BlockSpec((block_n, block_b, D), _neg_index),
            ],
            out_specs=pl.BlockSpec((1, block_b, 1),
                                   lambda ib, jp, k: (jp, ib, 0)),
            scratch_shapes=[pltpu.VMEM((block_b, 1), jnp.float32)],
        ),
        compiler_params=pltpu.CompilerParams(
            dimension_semantics=("parallel", "parallel", "arbitrary"),
            vmem_limit_bytes=vmem_limit,
        ),
    )(anchor, negative)

    # Tiny O(B) epilogue in plain JAX: positive-pair term, partial-sum combine,
    # -log and the final mean.
    neg_sum = jnp.sum(partial[:, :, 0], axis=0)                    # (B,) f32
    a32 = anchor.astype(jnp.float32)
    p32 = positive.astype(jnp.float32)
    pos = jnp.exp(jnp.sum(a32 * p32, axis=-1) / temp)              # (B,) f32
    return jnp.mean(-jnp.log(pos / (neg_sum + pos + 1e-6)))


def _reference(anchor, positive, negative, temp):
    a = anchor.astype(jnp.float32)
    p = positive.astype(jnp.float32)
    n = negative.astype(jnp.float32)
    pos = jnp.exp(jnp.sum(a * p, axis=-1) / temp)
    neg = jnp.sum(jnp.exp(jnp.sum(a[None] * n, axis=-1) / temp), axis=0)
    return jnp.mean(-jnp.log(pos / (neg + pos + 1e-6)))


if __name__ == "__main__":
    key = jax.random.PRNGKey(0)
    k1, k2, k3, k4 = jax.random.split(key, 4)

    # --- Test 1: small f32; single B tile -> N sweep split over 2 parallel ---
    # --- grid entries (dual-TC path), MXU reduce, no masking. ----------------
    B, D, N, temp = 8, 32, 4, 0.5
    anchor = jax.random.normal(k1, (B, D), dtype=jnp.float32)
    positive = jax.random.normal(k2, (B, D), dtype=jnp.float32)
    negative = jax.random.normal(k3, (N, B, D), dtype=jnp.float32)
    loss = info_nce_loss(anchor, positive, negative, temp=temp, block_n=2)
    jax.block_until_ready(loss)
    ref = _reference(anchor, positive, negative, temp)
    assert jnp.allclose(loss, ref, rtol=1e-4, atol=1e-4), (loss, ref)

    # --- Test 2: two B tiles, multi-step N sweep with ragged tail (masked ----
    # --- last block only) and a chunked (pl.loop) slab sweep. ----------------
    B2, D2, N2, temp2 = 16, 128, 20, 2.0
    k5, k6, k7 = jax.random.split(k4, 3)
    a2 = jax.random.normal(k5, (B2, D2), dtype=jnp.float32)
    p2 = jax.random.normal(k6, (B2, D2), dtype=jnp.float32)
    n2 = jax.random.normal(k7, (N2, B2, D2), dtype=jnp.float32)
    loss2 = info_nce_loss(a2, p2, n2, temp=temp2, block_n=8, chunk_n=4)
    jax.block_until_ready(loss2)
    ref2 = _reference(a2, p2, n2, temp2)
    assert jnp.allclose(loss2, ref2, rtol=1e-4, atol=1e-4), (loss2, ref2)

    # --- Test 3: bf16 inputs (bf16 products + MXU f32 accumulation), checked -
    # --- against the f32 reference on the same bf16-rounded inputs. ----------
    a3 = a2.astype(jnp.bfloat16)
    p3 = p2.astype(jnp.bfloat16)
    n3 = n2.astype(jnp.bfloat16)
    loss3 = info_nce_loss(a3, p3, n3, temp=temp2)
    jax.block_until_ready(loss3)
    ref3 = _reference(a3, p3, n3, temp2)
    assert jnp.allclose(loss3, ref3, rtol=1e-1, atol=1e-1), (loss3, ref3)

    print("KERNEL_OK")
</pallas_src>

<mosaic_0001>
module attributes {stable_mosaic.version = 11 : i64} {
  func.func @_neg_sum_kernel(%arg0: i32, %arg1: i32, %arg2: i32, %arg3: memref<8x32xf32, #tpu.memory_space<vmem>>, %arg4: memref<2x8x32xf32, #tpu.memory_space<vmem>>, %arg5: memref<1x8x1xf32, #tpu.memory_space<vmem>>, %arg6: memref<8x1xf32, #tpu.memory_space<vmem>>) attributes {dimension_semantics = [#tpu.dimension_semantics<parallel>, #tpu.dimension_semantics<parallel>, #tpu.dimension_semantics<arbitrary>], iteration_bounds = array<i64: 1, 2, 1>, scalar_prefetch = 0 : i64, scratch_operands = 1 : i64, tpu.core_type = #tpu.core_type<tc>, window_params = [{transform_indices = @transform_0, window_bounds = array<i64: 8, 32>}, {transform_indices = @transform_1, window_bounds = array<i64: 2, 8, 32>}, {transform_indices = @transform_2, window_bounds = array<i64: 1, 8, 1>}]} {
    %c0_i32 = arith.constant 0 : i32
    %0 = arith.cmpi eq, %arg2, %c0_i32 : i32
    %1 = arith.extui %0 : i1 to i32
    %c0_i32_0 = arith.constant 0 : i32
    %2 = arith.cmpi ne, %1, %c0_i32_0 : i32
    scf.if %2 {
      %cst_16 = arith.constant 0.000000e+00 : f32
      %27 = vector.broadcast %cst_16 : f32 to vector<8x1xf32>
      %c0_17 = arith.constant 0 : index
      %c0_18 = arith.constant 0 : index
      %28 = vector.load %arg6[%c0_17, %c0_18] : memref<8x1xf32, #tpu.memory_space<vmem>>, vector<8x1xf32>
      tpu.vector_store %arg6[%c0_17, %c0_18], %27 {strides = array<i32>} : memref<8x1xf32, #tpu.memory_space<vmem>>, vector<8x1xf32>,
    } else {
    }
    %c0 = arith.constant 0 : index
    %c0_1 = arith.constant 0 : index
    %3 = vector.load %arg3[%c0, %c0_1] : memref<8x32xf32, #tpu.memory_space<vmem>>, vector<8x32xf32>
    %cst = arith.constant 1.000000e+00 : f32
    %4 = vector.broadcast %cst : f32 to vector<32x1xf32>
    %c0_i32_2 = arith.constant 0 : i32
    %c1_i32 = arith.constant 1 : i32
    %5 = arith.muli %c0_i32_2, %c1_i32 : i32
    %c0_i32_3 = arith.constant 0 : i32
    %6 = arith.addi %c0_i32_3, %5 : i32
    %c2_i32 = arith.constant 2 : i32
    %7 = arith.muli %6, %c2_i32 : i32
    %8 = tpu.assume_multiple %7, 2 : i32
    %9 = arith.index_cast %8 : i32 to index
    %c0_4 = arith.constant 0 : index
    %c0_5 = arith.constant 0 : index
    %10 = vector.load %arg4[%9, %c0_4, %c0_5] : memref<2x8x32xf32, #tpu.memory_space<vmem>>, vector<2x8x32xf32>
    %11 = vector.shape_cast %3 : vector<8x32xf32> to vector<1x8x32xf32>
    %12 = vector.broadcast %11 : vector<1x8x32xf32> to vector<2x8x32xf32>
    %13 = arith.mulf %12, %10 : vector<2x8x32xf32>
    %14 = vector.shape_cast %13 : vector<2x8x32xf32> to vector<16x32xf32>
    %cst_6 = arith.constant dense<0.000000e+00> : vector<16x1xf32>
    %15 = tpu.matmul %14, %4, %cst_6 {dimension_numbers = #tpu.dot_dimension_numbers<[1], [0], [0], [1], [0, 0, 1, 1], [], []>, precision = #tpu.contract_precision<fp32>} : vector<16x32xf32>, vector<32x1xf32>, vector<16x1xf32> -> vector<16x1xf32>
    %cst_7 = arith.constant 2.000000e+00 : f32
    %16 = vector.broadcast %cst_7 : f32 to vector<16x1xf32>
    %17 = arith.mulf %15, %16 : vector<16x1xf32>
    %18 = math.exp %17 : vector<16x1xf32>
    %19 = vector.shape_cast %18 : vector<16x1xf32> to vector<2x8x1xf32>
    %c0_8 = arith.constant 0 : index
    %c0_9 = arith.constant 0 : index
    %20 = vector.load %arg6[%c0_8, %c0_9] : memref<8x1xf32, #tpu.memory_space<vmem>>, vector<8x1xf32>
    %cst_10 = arith.constant dense<0.000000e+00> : vector<8x1xf32>
    %21 = vector.multi_reduction <add>, %19, %cst_10 [0] : vector<2x8x1xf32> to vector<8x1xf32>
    %22 = arith.addf %20, %21 : vector<8x1xf32>
    %c0_11 = arith.constant 0 : index
    %c0_12 = arith.constant 0 : index
    %23 = vector.load %arg6[%c0_11, %c0_12] : memref<8x1xf32, #tpu.memory_space<vmem>>, vector<8x1xf32>
    tpu.vector_store %arg6[%c0_11, %c0_12], %22 {strides = array<i32>} : memref<8x1xf32, #tpu.memory_space<vmem>>, vector<8x1xf32>,
    %c1_i32_13 = arith.constant 1 : i32
    %c0_i32_14 = arith.constant 0 : i32
    %24 = arith.cmpi eq, %arg2, %c0_i32_14 : i32
    %25 = arith.extui %24 : i1 to i32
    %c0_i32_15 = arith.constant 0 : i32
    %26 = arith.cmpi ne, %25, %c0_i32_15 : i32
    scf.if %26 {
      %c0_16 = arith.constant 0 : index
      %c0_17 = arith.constant 0 : index
      %27 = vector.load %arg6[%c0_16, %c0_17] : memref<8x1xf32, #tpu.memory_space<vmem>>, vector<8x1xf32>
      %28 = vector.shape_cast %27 : vector<8x1xf32> to vector<1x8x1xf32>
      %c0_18 = arith.constant 0 : index
      %c0_19 = arith.constant 0 : index
      %c0_20 = arith.constant 0 : index
      %29 = vector.load %arg5[%c0_18, %c0_19, %c0_20] : memref<1x8x1xf32, #tpu.memory_space<vmem>>, vector<1x8x1xf32>
      tpu.vector_store %arg5[%c0_18, %c0_19, %c0_20], %28 {strides = array<i32>} : memref<1x8x1xf32, #tpu.memory_space<vmem>>, vector<1x8x1xf32>,
    } else {
    }
    return
  }
  func.func @transform_0(%arg0: i32, %arg1: i32, %arg2: i32) -> (i32, i32) {
    %c0_i32 = arith.constant 0 : i32
    %c0_i32_0 = arith.constant 0 : i32
    return %arg0, %c0_i32 : i32, i32
  }
  func.func @transform_1(%arg0: i32, %arg1: i32, %arg2: i32) -> (i32, i32, i32) {
    %c1_i32 = arith.constant 1 : i32
    %0 = arith.muli %arg1, %c1_i32 : i32
    %1 = arith.addi %0, %arg2 : i32
    %c1_i32_0 = arith.constant 1 : i32
    %2 = arith.minsi %1, %c1_i32_0 : i32
    %c0_i32 = arith.constant 0 : i32
    %c0_i32_1 = arith.constant 0 : i32
    return %2, %arg0, %c0_i32 : i32, i32, i32
  }
  func.func @transform_2(%arg0: i32, %arg1: i32, %arg2: i32) -> (i32, i32, i32) {
    %c0_i32 = arith.constant 0 : i32
    %c0_i32_0 = arith.constant 0 : i32
    return %arg1, %arg0, %c0_i32 : i32, i32, i32
  }
}

</mosaic_0001>

<llo_original>
// kernel: tpu_custom_call.1
$region0: #{tpu_custom_call.1}
  #allocation0 [shape = 'u32[]', space=smem, size = 0x4, offset = 0x4, fixed_abs, tag = 'smem constant byte address 0x4 - core index']
  #allocation1 [shape = 'u32[144,128]{1,0:T(1,128)}', space=vmem, size = 0x12000, scoped, tag = 'internal scratch']
  #allocation2 [shape = 'f32[8,1]{1,0:T(8,128)}', space=vmem, size = 0x1000, scoped, tag = 'scratch operand']
  %s0 = inlined_call_operand.hbm [shape: f32[8,32], index: 0, kind: input, shape index: {}]
  %s1 = inlined_call_operand.hbm [shape: f32[4,8,32], index: 1, kind: input, shape index: {}]
  %s2 = inlined_call_operand.vmem [shape: f32[2,8,1], index: 2, kind: output, shape index: {}]
  %s3 = sld [smem:[#allocation0]]
  $region57: #{tpu_custom_call.1} parent=0
    _
  %s5 = ssub.s32 1, %s3
  %s6 = scalar_select 0, %s5, %s3
  $region1: #{tpu_custom_call.1} parent=0
    #allocation3 [shape = 'u8[4096]{0}', space=vmem, size = 0x1000, scoped, tag = 'input window, operand 0, single buffered']
    #allocation4 [shape = 's32[2]{0}', space=sflag, size = 0x8, scoped, tag = 'scoped memory for tpu_custom_call.1']
    #allocation5 [shape = 'u8[16384]{0}', space=vmem, size = 0x4000, scoped, tag = 'input window, operand 1']
    #allocation6 [shape = 's32[2]{0}', space=sflag, size = 0x8, scoped, tag = 'scoped memory for tpu_custom_call.1']
    %7 = vsyncpa [#allocation4], 0
    %8 = vsyncpa [#allocation6], 0
    %s9 = scalar_lea.sflag [#allocation6], 1
    %10 = vsyncpa %s9, 0
    loop: start=0, step=1, limit=4
    $region2: #{tpu_custom_call.1} parent=1 // loop_pre_header
      _
    $region3: #{tpu_custom_call.1} parent=1 // loop_header
      %s12 = sphi 0, %s16
      %p13 = scmp.ge.s32.totalorder %s12, 4
      %s19 = sphi 0, %s38
      %s20 = sphi 0, %s34
      %s21 = sphi 0, %s30
      %s22 = sphi 0, %s19
      %s23 = sphi 0, %s20
      %s24 = sphi 0, %s21
      %s25 = sphi 0, %s22
      %s26 = sphi 0, %s23
      %s27 = sphi 0, %s24
      %s41 = sphi 0, %s43
      %s44 = sphi 0, %s41
      %s45 = sphi 0, %s44
      %s61 = sphi 0, %s45
      %s75 = sphi 0, %s77
      %s78 = sphi 0, %s75
      %s79 = sphi 0, %s78
      %s95 = sphi 0, %s79
      %s103 = sphi 0, %s105
      %s106 = sphi 0, %s103
      %s107 = sphi 0, %s106
      %s123 = sphi 0, %s107
    $region4: #{tpu_custom_call.1} parent=1 // loop_header_branch
      %15 = sbr.rel (%p13) target = $region8
    $region5: #{tpu_custom_call.1} parent=1 // loop_body
      %s17 = ssub.s32 %s12, 1
      %s18 = ssub.s32 %s12, 2
      %s28 = sadd.s32 1, %s21
      %p29 = scmp.ge.s32.totalorder %s28, 1
      %s30 = scalar_select %p29, 0, %s28
      %s31 = sadd.s32 1, %s20
      %s32 = scalar_select %p29, %s31, %s20
      %p33 = scmp.ge.s32.totalorder %s32, 2
      %s34 = scalar_select %p33, 0, %s32
      %s35 = sadd.s32 1, %s19
      %s36 = scalar_select %p33, %s35, %s19
      %p37 = scmp.ge.s32.totalorder %s36, 1
      %s38 = scalar_select %p37, 0, %s36
      %s39 = ssub.s32 %s19, %s38
      %p40 = scmp.eq.s32.totalorder %s39, 0
      %s42 = sadd.s32 %s41, 1
      %s43 = scalar_select %p40, %s41, %s42
      %p46 = pneg %p40
      %p47 = scmp.eq.s32.totalorder %s12, 1
      %p48 = por %p46, %p47
      %p49 = scmp.ne.s32.totalorder %s41, %s44
      %p50 = scmp.eq.s32.totalorder %s12, 0
      %p51 = por %p49, %p50
      %p52 = scmp.ne.s32.totalorder %s41, %s44
      %p53 = scmp.eq.s32.totalorder %s17, 1
      %p54 = por %p52, %p53
      %p55 = scmp.ne.s32.totalorder %s44, %s45
      %p56 = scmp.eq.s32.totalorder %s17, 0
      %p57 = por %p55, %p56
      %p58 = scmp.ne.s32.totalorder %s44, %s45
      %p59 = scmp.eq.s32.totalorder %s18, 1
      %p60 = por %p58, %p59
      %p62 = scmp.ne.s32.totalorder %s45, %s61
      %p63 = scmp.eq.s32.totalorder %s18, 0
      %p64 = por %p62, %p63
      %s65 = sadd.s32 %s20, %s21
      %p66 = scmp.lt.s32.totalorder %s65, 1
      %s67 = scalar_select %p66, %s65, 1
      %s68 = sadd.s32 %s34, %s30
      %p69 = scmp.lt.s32.totalorder %s68, 1
      %s70 = scalar_select %p69, %s68, 1
      %s71 = ssub.s32 %s67, %s70
      %s72 = ssub.s32 %s19, %s38
      %s73 = sor.u32 %s71, %s72
      %p74 = scmp.eq.s32.totalorder %s73, 0
      %s76 = sadd.s32 %s75, 1
      %s77 = scalar_select %p74, %s75, %s76
      %p80 = pneg %p74
      %p81 = scmp.eq.s32.totalorder %s12, 1
      %p82 = por %p80, %p81
      %p83 = scmp.ne.s32.totalorder %s75, %s78
      %p84 = scmp.eq.s32.totalorder %s12, 0
      %p85 = por %p83, %p84
      %p86 = scmp.ne.s32.totalorder %s75, %s78
      %p87 = scmp.eq.s32.totalorder %s17, 1
      %p88 = por %p86, %p87
      %p89 = scmp.ne.s32.totalorder %s78, %s79
      %p90 = scmp.eq.s32.totalorder %s17, 0
      %p91 = por %p89, %p90
      %p92 = scmp.ne.s32.totalorder %s78, %s79
      %p93 = scmp.eq.s32.totalorder %s18, 1
      %p94 = por %p92, %p93
      %p96 = scmp.ne.s32.totalorder %s79, %s95
      %p97 = scmp.eq.s32.totalorder %s18, 0
      %p98 = por %p96, %p97
      %s99 = ssub.s32 %s20, %s34
      %s100 = ssub.s32 %s19, %s38
      %s101 = sor.u32 %s99, %s100
      %p102 = scmp.eq.s32.totalorder %s101, 0
      %s104 = sadd.s32 %s103, 1
      %s105 = scalar_select %p102, %s103, %s104
      %p108 = pneg %p102
      %p109 = scmp.eq.s32.totalorder %s12, 1
      %p110 = por %p108, %p109
      %p111 = scmp.ne.s32.totalorder %s103, %s106
      %p112 = scmp.eq.s32.totalorder %s12, 0
      %p113 = por %p111, %p112
      %p114 = scmp.ne.s32.totalorder %s103, %s106
      %p115 = scmp.eq.s32.totalorder %s17, 1
      %p116 = por %p114, %p115
      %p117 = scmp.ne.s32.totalorder %s106, %s107
      %p118 = scmp.eq.s32.totalorder %s17, 0
      %p119 = por %p117, %p118
      %p120 = scmp.ne.s32.totalorder %s106, %s107
      %p121 = scmp.eq.s32.totalorder %s18, 1
      %p122 = por %p120, %p121
      %p124 = scmp.ne.s32.totalorder %s107, %s123
      %p125 = scmp.eq.s32.totalorder %s18, 0
      %p126 = por %p124, %p125
      %p127 = scmp.le.s32.totalorder 1, %s12
      %p128 = scmp.lt.s32.totalorder %s12, 3
      %p129 = pnand %p127, %p128
      %p130 = pneg %p129
      // Predicated region
      $region9: #{tpu_custom_call.1} parent=5 // pred_check
        _
      $region10: #{tpu_custom_call.1} parent=5 // pred_check_branch
        %132 = sbr.rel (%p129) target = $region12
      $region11: #{tpu_custom_call.1} parent=5 // pred_region
        %s133 = ssub.s32 %s12, 1
        // Predicated region
        $region13: #{tpu_custom_call.1} parent=11 // pred_check
          %p134 = pneg %p57
        $region14: #{tpu_custom_call.1} parent=11 // pred_check_branch
          %136 = sbr.rel (%p134) target = $region16
        $region15: #{tpu_custom_call.1} parent=11 // pred_region
          %s138 = ssub.s32 128, 128
          %139 = vsyncadd [#allocation4], %s138
          %s140 = smul.addr %s22, 128
          %s141 = scalar_lea.hbm %s0, %s140
          %s143 = sshll.u32 [#allocation3], 4
          %s144 = int_to_ptr.vmem [resolvable:$true] %s143
          %146 = dma.hbm_to_vmem [thread:$0]  %s141, 128, %s144, [#allocation4]
        $region16: #{tpu_custom_call.1} parent=11 // pred_fallthru
          _
      $region12: #{tpu_custom_call.1} parent=5 // pred_fallthru
        _
      %p147 = scmp.lt.s32.totalorder %s12, 2
      // Predicated region
      $region17: #{tpu_custom_call.1} parent=5 // pred_check
        %p148 = pneg %p147
      $region18: #{tpu_custom_call.1} parent=5 // pred_check_branch
        %150 = sbr.rel (%p148) target = $region20
      $region19: #{tpu_custom_call.1} parent=5 // pred_region
        // Predicated region
        $region21: #{tpu_custom_call.1} parent=19 // pred_check
          %p151 = pneg %p85
        $region22: #{tpu_custom_call.1} parent=19 // pred_check_branch
          %153 = sbr.rel (%p151) target = $region24
        $region23: #{tpu_custom_call.1} parent=19 // pred_region
          %s154 = sand.u32 %s75, 1
          %s155 = scalar_lea.sflag [#allocation6], %s154
          %s156 = sand.u32 %s75, 1
          %s157 = smul.addr %s156, 16
          %s158 = scalar_lea.vmem [#allocation5], %s157
          %s159 = sadd.s32 %s20, %s21
          %p160 = scmp.lt.s32.totalorder %s159, 1
          %s161 = scalar_select %p160, %s159, 1
          %s162 = smul.u32 2, %s161
          %s164 = ssub.s32 256, 256
          %165 = vsyncadd %s155, %s164
          %s166 = sadd.s32 %s19, %s162
          %s167 = smul.addr %s166, 128
          %s168 = scalar_lea.hbm %s1, %s167
          %s169 = sshll.u32 %s158, 4
          %s170 = int_to_ptr.vmem [resolvable:$true] %s169
          %175 = dma.hbm_to_vmem [thread:$0]  %s168, 256, %s170, %s155, 128, 128, 8
        $region24: #{tpu_custom_call.1} parent=19 // pred_fallthru
          _
      $region20: #{tpu_custom_call.1} parent=5 // pred_fallthru
        _
      %p176 = scmp.le.s32.totalorder 1, %s12
      %p177 = scmp.lt.s32.totalorder %s12, 3
      %p178 = pnand %p176, %p177
      %p179 = pneg %p178
      // Predicated region
      $region25: #{tpu_custom_call.1} parent=5 // pred_check
        _
      $region26: #{tpu_custom_call.1} parent=5 // pred_check_branch
        %181 = sbr.rel (%p178) target = $region28
      $region27: #{tpu_custom_call.1} parent=5 // pred_region
        %s182 = ssub.s32 %s12, 1
        // Predicated region
        $region29: #{tpu_custom_call.1} parent=27 // pred_check
          %p183 = pneg %p57
        $region30: #{tpu_custom_call.1} parent=27 // pred_check_branch
          %185 = sbr.rel (%p183) target = $region32
        $region31: #{tpu_custom_call.1} parent=27 // pred_region
          %186 = dma.done [#allocation4], 128
        $region32: #{tpu_custom_call.1} parent=27 // pred_fallthru
          _
        %s187 = sand.u32 %s78, 1
        %s188 = scalar_lea.sflag [#allocation6], %s187
        %s189 = sand.u32 %s78, 1
        %s190 = smul.addr %s189, 16
        %s191 = scalar_lea.vmem [#allocation5], %s190
        // Predicated region
        $region33: #{tpu_custom_call.1} parent=27 // pred_check
          %p192 = pneg %p91
        $region34: #{tpu_custom_call.1} parent=27 // pred_check_branch
          %194 = sbr.rel (%p192) target = $region36
        $region35: #{tpu_custom_call.1} parent=27 // pred_region
          %195 = dma.done %s188, 256
        $region36: #{tpu_custom_call.1} parent=27 // pred_fallthru
          _
        %p196 = pneg %p57
        %p197 = pneg %p54
        %s198 = sand.u32 %s78, 1
        %s199 = scalar_lea.sflag [#allocation6], %s198
        %s200 = sand.u32 %s78, 1
        %s201 = smul.addr %s200, 16
        %s202 = scalar_lea.vmem [#allocation5], %s201
        %p203 = pneg %p91
        %p204 = pneg %p88
        %p205 = pneg %p119
        %p206 = pneg %p116
        %p207 = scmp.lt.s32.totalorder %s23, 1
        %s208 = scalar_select %p207, %s23, 1
        %p209 = scmp.lt.s32.totalorder %s22, 0
        %s210 = scalar_select %p209, %s22, 0
        %s211 = sadd.s32 %s210, %s208
        %s212 = smul.addr %s211, 8
        %s213 = scalar_lea.vmem %s2, %s212
        %s214 = sadd.s32 %s23, %s24
        %p215 = scmp.lt.s32.totalorder %s214, 1
        %s216 = scalar_select %p215, %s214, 1
        %s217 = smul.u32 2, %s216
        %p218 = scmp.lt.s32.totalorder %s23, 1
        %s219 = scalar_select %p218, %s23, 1
        %p220 = scmp.lt.s32.totalorder %s22, 0
        %s221 = scalar_select %p220, %s22, 0
        %s222 = sadd.s32 %s221, %s219
        %s223 = smul.addr %s222, 8
        %s224 = scalar_lea.vmem %s2, %s223
        %p225 = scmp.eq.s32.totalorder %s24, 0
        // Predicated region
        $region37: #{tpu_custom_call.1} parent=27 // pred_check
          %p226 = pneg %p225
        $region38: #{tpu_custom_call.1} parent=27 // pred_check_branch
          %228 = sbr.rel (%p226) target = $region40
        $region39: #{tpu_custom_call.1} parent=27 // pred_region
          %vm229 = vcmask 7168
          %230 = vst.msk [vmem:[#allocation2] sm:$0xff] %vm229, 0.0
        $region40: #{tpu_custom_call.1} parent=27 // pred_fallthru
          _
        %v231 = vld [vmem:[#allocation3] sm:$0xff]
        %s232 = smul.u32 0, 8
        %s233 = scalar_lea.vmem %s191, %s232 [#allocation5]
        %v234 = vld [vmem:[%s233] sm:$0xff]
        %v235 = vld [vmem:[%s233 + $0x8] sm:$0xff]
        %v236 = vmul.f32 %v231, %v234
        %v237 = vmul.f32 %v231, %v235
        %vm238 = vcmask 261120
        %v240 = vsel %vm238, %v236, 0
        %v243 = vsel %vm238, %v237, 0
        %245 = vmatprep.subr.mxu0 0.0
        %246 = vmatpush1.msra.mxu0 0.0
        %247 = vmatprep.subr.mxu0 0.0
        %248 = vmatpush1.msra.mxu0 0.0
        %249 = vmatprep.subr.mxu0 0.0
        %250 = vmatpush1.msra.mxu0 0.0
        %251 = vmatprep.subr.mxu0 0.0
        %252 = vmatpush1.msra.mxu0 0.0
        %253 = vmatprep.subr.mxu0 0.0
        %254 = vmatpush1.msra.mxu0 0.0
        %255 = vmatprep.subr.mxu0 0.0
        %256 = vmatpush1.msra.mxu0 0.0
        %257 = vmatprep.subr.mxu0 0.0
        %258 = vmatpush1.msra.mxu0 0.0
        %259 = vmatprep.subr.mxu0 0.0
        %260 = vmatpush1.msra.mxu0 0.0
        %261 = vmatprep.subr.mxu0 0.0
        %262 = vmatpush1.msra.mxu0 0.0
        %263 = vmatprep.subr.mxu0 0.0
        %264 = vmatpush1.msra.mxu0 0.0
        %265 = vmatprep.subr.mxu0 0.0
        %266 = vmatpush1.msra.mxu0 0.0
        %267 = vmatprep.subr.mxu0 0.0
        %268 = vmatpush1.msra.mxu0 0.0
        %269 = vmatprep.subr.mxu0 0.0
        %270 = vmatpush1.msra.mxu0 1.0
        %271 = vmatprep.subr.mxu0 0.0
        %272 = vmatpush1.msra.mxu0 1.0
        %273 = vmatprep.subr.mxu0 0.0
        %274 = vmatpush1.msra.mxu0 1.0
        %275 = vmatprep.subr.mxu0 0.0
        %276 = vmatpush1.msra.mxu0 1.0
        %277 = vmatprep.subr.mxu0 0.0
        %278 = vmatpush2.msra.mxu0 0.0
        %279 = vmatprep.subr.mxu0 0.0
        %280 = vmatpush2.msra.mxu0 0.0
        %281 = vmatprep.subr.mxu0 0.0
        %282 = vmatpush2.msra.mxu0 0.0
        %283 = vmatprep.subr.mxu0 0.0
        %284 = vmatpush2.msra.mxu0 0.0
        %285 = vmatprep.subr.mxu0 0.0
        %286 = vmatpush2.msra.mxu0 0.0
        %287 = vmatprep.subr.mxu0 0.0
        %288 = vmatpush2.msra.mxu0 0.0
        %289 = vmatprep.subr.mxu0 0.0
        %290 = vmatpush2.msra.mxu0 0.0
        %291 = vmatprep.subr.mxu0 0.0
        %292 = vmatpush2.msra.mxu0 0.0
        %293 = vmatprep.subr.mxu0 0.0
        %294 = vmatpush2.msra.mxu0 0.0
        %295 = vmatprep.subr.mxu0 0.0
        %296 = vmatpush2.msra.mxu0 0.0
        %297 = vmatprep.subr.mxu0 0.0
        %298 = vmatpush2.msra.mxu0 0.0
        %299 = vmatprep.subr.mxu0 0.0
        %300 = vmatpush2.msra.mxu0 0.0
        %301 = vmatprep.subr.mxu0 0.0
        %302 = vmatpush2.msra.mxu0 0.0
        %303 = vmatprep.subr.mxu0 0.0
        %304 = vmatpush2.msra.mxu0 0.0
        %305 = vmatprep.subr.mxu0 0.0
        %306 = vmatpush2.msra.mxu0 0.0
        %307 = vmatprep.subr.mxu0 0.0
        %308 = vmatpush2.msra.mxu0 0.0
        %309 = vmatprep.mubr.f32.mxu0 0.0
        %v310 = vand.u32 %v240, 4294901760
        %v311 = vsub.f32 %v240, %v310
        %v312 = vand.u32 %v311, 4294901760
        %v313 = vsub.f32 %v311, %v312
        %v314 = vand.u32 %v313, 4294901760
        %315 = vmatmul.mubr.f32.gmra.mxu0 %v314
        %v316 = vpop.f32.mrf.mxu0
        %v317 = vadd.f32 0.0, %v316
        %v318 = vpop.f32.mrf.mxu0
        %319 = vmatprep.mubr.f32.mxu0 0.0
        %v320 = vand.u32 %v243, 4294901760
        %v321 = vsub.f32 %v243, %v320
        %v322 = vand.u32 %v321, 4294901760
        %v323 = vsub.f32 %v321, %v322
        %v324 = vand.u32 %v323, 4294901760
        %325 = vmatmul.mubr.f32.gmra.mxu0 %v324
        %v326 = vpop.f32.mrf.mxu0
        %v327 = vadd.f32 0.0, %v326
        %v328 = vpop.f32.mrf.mxu0
        %329 = vdwg.mxu0
        %330 = vmatprep.subr.mxu0 0.0
        %331 = vmatpush1.msra.mxu0 0.0
        %332 = vmatprep.subr.mxu0 0.0
        %333 = vmatpush1.msra.mxu0 0.0
        %334 = vmatprep.subr.mxu0 0.0
        %335 = vmatpush1.msra.mxu0 0.0
        %336 = vmatprep.subr.mxu0 0.0
        %337 = vmatpush1.msra.mxu0 0.0
        %338 = vmatprep.subr.mxu0 0.0
        %339 = vmatpush1.msra.mxu0 0.0
        %340 = vmatprep.subr.mxu0 0.0
        %341 = vmatpush1.msra.mxu0 0.0
        %342 = vmatprep.subr.mxu0 0.0
        %343 = vmatpush1.msra.mxu0 0.0
        %344 = vmatprep.subr.mxu0 0.0
        %345 = vmatpush1.msra.mxu0 0.0
        %346 = vmatprep.subr.mxu0 0.0
        %347 = vmatpush1.msra.mxu0 0.0
        %348 = vmatprep.subr.mxu0 0.0
        %349 = vmatpush1.msra.mxu0 0.0
        %350 = vmatprep.subr.mxu0 0.0
        %351 = vmatpush1.msra.mxu0 0.0
        %352 = vmatprep.subr.mxu0 0.0
        %353 = vmatpush1.msra.mxu0 0.0
        %354 = vmatprep.subr.mxu0 0.0
        %355 = vmatpush1.msra.mxu0 0.0
        %356 = vmatprep.subr.mxu0 0.0
        %357 = vmatpush1.msra.mxu0 0.0
        %358 = vmatprep.subr.mxu0 0.0
        %359 = vmatpush1.msra.mxu0 0.0
        %360 = vmatprep.subr.mxu0 0.0
        %361 = vmatpush1.msra.mxu0 0.0
        %362 = vmatprep.subr.mxu0 0.0
        %363 = vmatpush2.msra.mxu0 0.0
        %364 = vmatprep.subr.mxu0 0.0
        %365 = vmatpush2.msra.mxu0 0.0
        %366 = vmatprep.subr.mxu0 0.0
        %367 = vmatpush2.msra.mxu0 0.0
        %368 = vmatprep.subr.mxu0 0.0
        %369 = vmatpush2.msra.mxu0 0.0
        %370 = vmatprep.subr.mxu0 0.0
        %371 = vmatpush2.msra.mxu0 0.0
        %372 = vmatprep.subr.mxu0 0.0
        %373 = vmatpush2.msra.mxu0 0.0
        %374 = vmatprep.subr.mxu0 0.0
        %375 = vmatpush2.msra.mxu0 0.0
        %376 = vmatprep.subr.mxu0 0.0
        %377 = vmatpush2.msra.mxu0 0.0
        %378 = vmatprep.subr.mxu0 0.0
        %379 = vmatpush2.msra.mxu0 0.0
        %380 = vmatprep.subr.mxu0 0.0
        %381 = vmatpush2.msra.mxu0 0.0
        %382 = vmatprep.subr.mxu0 0.0
        %383 = vmatpush2.msra.mxu0 0.0
        %384 = vmatprep.subr.mxu0 0.0
        %385 = vmatpush2.msra.mxu0 0.0
        %386 = vmatprep.subr.mxu0 0.0
        %387 = vmatpush2.msra.mxu0 0.0
        %388 = vmatprep.subr.mxu0 0.0
        %389 = vmatpush2.msra.mxu0 0.0
        %390 = vmatprep.subr.mxu0 0.0
        %391 = vmatpush2.msra.mxu0 0.0
        %392 = vmatprep.subr.mxu0 0.0
        %393 = vmatpush2.msra.mxu0 0.0
        %394 = vmatprep.mubr.f32.mxu0 0.0
        %v395 = vand.u32 %v240, 4294901760
        %396 = vmatmul.mubr.f32.gmra.mxu0 %v395
        %v397 = vpop.f32.mrf.mxu0
        %v398 = vadd.f32 %v317, %v397
        %v399 = vpop.f32.mrf.mxu0
        %400 = vmatprep.mubr.f32.mxu0 0.0
        %v401 = vand.u32 %v243, 4294901760
        %402 = vmatmul.mubr.f32.gmra.mxu0 %v401
        %v403 = vpop.f32.mrf.mxu0
        %v404 = vadd.f32 %v327, %v403
        %v405 = vpop.f32.mrf.mxu0
        %406 = vdwg.mxu0
        %407 = vmatprep.subr.mxu0 0.0
        %408 = vmatpush1.msra.mxu0 0.0
        %409 = vmatprep.subr.mxu0 0.0
        %410 = vmatpush1.msra.mxu0 0.0
        %411 = vmatprep.subr.mxu0 0.0
        %412 = vmatpush1.msra.mxu0 0.0
        %413 = vmatprep.subr.mxu0 0.0
        %414 = vmatpush1.msra.mxu0 0.0
        %415 = vmatprep.subr.mxu0 0.0
        %416 = vmatpush1.msra.mxu0 0.0
        %417 = vmatprep.subr.mxu0 0.0
        %418 = vmatpush1.msra.mxu0 0.0
        %419 = vmatprep.subr.mxu0 0.0
        %420 = vmatpush1.msra.mxu0 0.0
        %421 = vmatprep.subr.mxu0 0.0
        %422 = vmatpush1.msra.mxu0 0.0
        %423 = vmatprep.subr.mxu0 0.0
        %424 = vmatpush1.msra.mxu0 0.0
        %425 = vmatprep.subr.mxu0 0.0
        %426 = vmatpush1.msra.mxu0 0.0
        %427 = vmatprep.subr.mxu0 0.0
        %428 = vmatpush1.msra.mxu0 0.0
        %429 = vmatprep.subr.mxu0 0.0
        %430 = vmatpush1.msra.mxu0 0.0
        %431 = vmatprep.subr.mxu0 0.0
        %432 = vmatpush1.msra.mxu0 0.0
        %433 = vmatprep.subr.mxu0 0.0
        %434 = vmatpush1.msra.mxu0 0.0
        %435 = vmatprep.subr.mxu0 0.0
        %436 = vmatpush1.msra.mxu0 0.0
        %437 = vmatprep.subr.mxu0 0.0
        %438 = vmatpush1.msra.mxu0 0.0
        %439 = vmatprep.subr.mxu0 0.0
        %440 = vmatpush2.msra.mxu0 0.0
        %441 = vmatprep.subr.mxu0 0.0
        %442 = vmatpush2.msra.mxu0 0.0
        %443 = vmatprep.subr.mxu0 0.0
        %444 = vmatpush2.msra.mxu0 0.0
        %445 = vmatprep.subr.mxu0 0.0
        %446 = vmatpush2.msra.mxu0 0.0
        %447 = vmatprep.subr.mxu0 0.0
        %448 = vmatpush2.msra.mxu0 0.0
        %449 = vmatprep.subr.mxu0 0.0
        %450 = vmatpush2.msra.mxu0 0.0
        %451 = vmatprep.subr.mxu0 0.0
        %452 = vmatpush2.msra.mxu0 0.0
        %453 = vmatprep.subr.mxu0 0.0
        %454 = vmatpush2.msra.mxu0 0.0
        %455 = vmatprep.subr.mxu0 0.0
        %456 = vmatpush2.msra.mxu0 0.0
        %457 = vmatprep.subr.mxu0 0.0
        %458 = vmatpush2.msra.mxu0 0.0
        %459 = vmatprep.subr.mxu0 0.0
        %460 = vmatpush2.msra.mxu0 0.0
        %461 = vmatprep.subr.mxu0 0.0
        %462 = vmatpush2.msra.mxu0 0.0
        %463 = vmatprep.subr.mxu0 0.0
        %464 = vmatpush2.msra.mxu0 0.0
        %465 = vmatprep.subr.mxu0 0.0
        %466 = vmatpush2.msra.mxu0 0.0
        %467 = vmatprep.subr.mxu0 0.0
        %468 = vmatpush2.msra.mxu0 0.0
        %469 = vmatprep.subr.mxu0 0.0
        %470 = vmatpush2.msra.mxu0 0.0
        %471 = vmatprep.mubr.f32.mxu0 0.0
        %v472 = vand.u32 %v240, 4294901760
        %v473 = vsub.f32 %v240, %v472
        %474 = vmatmul.mubr.f32.gmra.mxu0 %v473
        %v475 = vpop.f32.mrf.mxu0
        %v476 = vadd.f32 %v398, %v475
        %v477 = vpop.f32.mrf.mxu0
        %478 = vmatprep.mubr.f32.mxu0 0.0
        %v479 = vand.u32 %v243, 4294901760
        %v480 = vsub.f32 %v243, %v479
        %481 = vmatmul.mubr.f32.gmra.mxu0 %v480
        %v482 = vpop.f32.mrf.mxu0
        %v483 = vadd.f32 %v404, %v482
        %v484 = vpop.f32.mrf.mxu0
        %485 = vdwg.mxu0
        %486 = vmatprep.subr.mxu0 0.0
        %487 = vmatpush1.msra.mxu0 0.0
        %488 = vmatprep.subr.mxu0 0.0
        %489 = vmatpush1.msra.mxu0 0.0
        %490 = vmatprep.subr.mxu0 0.0
        %491 = vmatpush1.msra.mxu0 0.0
        %492 = vmatprep.subr.mxu0 0.0
        %493 = vmatpush1.msra.mxu0 0.0
        %494 = vmatprep.subr.mxu0 0.0
        %495 = vmatpush1.msra.mxu0 0.0
        %496 = vmatprep.subr.mxu0 0.0
        %497 = vmatpush1.msra.mxu0 0.0
        %498 = vmatprep.subr.mxu0 0.0
        %499 = vmatpush1.msra.mxu0 0.0
        %500 = vmatprep.subr.mxu0 0.0
        %501 = vmatpush1.msra.mxu0 0.0
        %502 = vmatprep.subr.mxu0 0.0
        %503 = vmatpush1.msra.mxu0 0.0
        %504 = vmatprep.subr.mxu0 0.0
        %505 = vmatpush1.msra.mxu0 0.0
        %506 = vmatprep.subr.mxu0 0.0
        %507 = vmatpush1.msra.mxu0 0.0
        %508 = vmatprep.subr.mxu0 0.0
        %509 = vmatpush1.msra.mxu0 0.0
        %510 = vmatprep.subr.mxu0 0.0
        %511 = vmatpush1.msra.mxu0 1.0
        %512 = vmatprep.subr.mxu0 0.0
        %513 = vmatpush1.msra.mxu0 1.0
        %514 = vmatprep.subr.mxu0 0.0
        %515 = vmatpush1.msra.mxu0 1.0
        %516 = vmatprep.subr.mxu0 0.0
        %517 = vmatpush1.msra.mxu0 1.0
        %518 = vmatprep.subr.mxu0 0.0
        %519 = vmatpush2.msra.mxu0 0.0
        %520 = vmatprep.subr.mxu0 0.0
        %521 = vmatpush2.msra.mxu0 0.0
        %522 = vmatprep.subr.mxu0 0.0
        %523 = vmatpush2.msra.mxu0 0.0
        %524 = vmatprep.subr.mxu0 0.0
        %525 = vmatpush2.msra.mxu0 0.0
        %526 = vmatprep.subr.mxu0 0.0
        %527 = vmatpush2.msra.mxu0 0.0
        %528 = vmatprep.subr.mxu0 0.0
        %529 = vmatpush2.msra.mxu0 0.0
        %530 = vmatprep.subr.mxu0 0.0
        %531 = vmatpush2.msra.mxu0 0.0
        %532 = vmatprep.subr.mxu0 0.0
        %533 = vmatpush2.msra.mxu0 0.0
        %534 = vmatprep.subr.mxu0 0.0
        %535 = vmatpush2.msra.mxu0 0.0
        %536 = vmatprep.subr.mxu0 0.0
        %537 = vmatpush2.msra.mxu0 0.0
        %538 = vmatprep.subr.mxu0 0.0
        %539 = vmatpush2.msra.mxu0 0.0
        %540 = vmatprep.subr.mxu0 0.0
        %541 = vmatpush2.msra.mxu0 0.0
        %542 = vmatprep.subr.mxu0 0.0
        %543 = vmatpush2.msra.mxu0 0.0
        %544 = vmatprep.subr.mxu0 0.0
        %545 = vmatpush2.msra.mxu0 0.0
        %546 = vmatprep.subr.mxu0 0.0
        %547 = vmatpush2.msra.mxu0 0.0
        %548 = vmatprep.subr.mxu0 0.0
        %549 = vmatpush2.msra.mxu0 0.0
        %550 = vmatprep.mubr.f32.mxu0 0.0
        %v551 = vand.u32 %v240, 4294901760
        %v552 = vsub.f32 %v240, %v551
        %v553 = vand.u32 %v552, 4294901760
        %554 = vmatmul.mubr.f32.gmra.mxu0 %v553
        %v555 = vpop.f32.mrf.mxu0
        %v556 = vadd.f32 %v476, %v555
        %v557 = vpop.f32.mrf.mxu0
        %558 = vmatprep.mubr.f32.mxu0 0.0
        %v559 = vand.u32 %v243, 4294901760
        %v560 = vsub.f32 %v243, %v559
        %v561 = vand.u32 %v560, 4294901760
        %562 = vmatmul.mubr.f32.gmra.mxu0 %v561
        %v563 = vpop.f32.mrf.mxu0
        %v564 = vadd.f32 %v483, %v563
        %v565 = vpop.f32.mrf.mxu0
        %566 = vdwg.mxu0
        %567 = vmatprep.subr.mxu0 0.0
        %568 = vmatpush1.msra.mxu0 0.0
        %569 = vmatprep.subr.mxu0 0.0
        %570 = vmatpush1.msra.mxu0 0.0
        %571 = vmatprep.subr.mxu0 0.0
        %572 = vmatpush1.msra.mxu0 0.0
        %573 = vmatprep.subr.mxu0 0.0
        %574 = vmatpush1.msra.mxu0 0.0
        %575 = vmatprep.subr.mxu0 0.0
        %576 = vmatpush1.msra.mxu0 0.0
        %577 = vmatprep.subr.mxu0 0.0
        %578 = vmatpush1.msra.mxu0 0.0
        %579 = vmatprep.subr.mxu0 0.0
        %580 = vmatpush1.msra.mxu0 0.0
        %581 = vmatprep.subr.mxu0 0.0
        %582 = vmatpush1.msra.mxu0 0.0
        %583 = vmatprep.subr.mxu0 0.0
        %584 = vmatpush1.msra.mxu0 0.0
        %585 = vmatprep.subr.mxu0 0.0
        %586 = vmatpush1.msra.mxu0 0.0
        %587 = vmatprep.subr.mxu0 0.0
        %588 = vmatpush1.msra.mxu0 0.0
        %589 = vmatprep.subr.mxu0 0.0
        %590 = vmatpush1.msra.mxu0 0.0
        %591 = vmatprep.subr.mxu0 0.0
        %592 = vmatpush1.msra.mxu0 0.0
        %593 = vmatprep.subr.mxu0 0.0
        %594 = vmatpush1.msra.mxu0 0.0
        %595 = vmatprep.subr.mxu0 0.0
        %596 = vmatpush1.msra.mxu0 0.0
        %597 = vmatprep.subr.mxu0 0.0
        %598 = vmatpush1.msra.mxu0 0.0
        %599 = vmatprep.subr.mxu0 0.0
        %600 = vmatpush2.msra.mxu0 0.0
        %601 = vmatprep.subr.mxu0 0.0
        %602 = vmatpush2.msra.mxu0 0.0
        %603 = vmatprep.subr.mxu0 0.0
        %604 = vmatpush2.msra.mxu0 0.0
        %605 = vmatprep.subr.mxu0 0.0
        %606 = vmatpush2.msra.mxu0 0.0
        %607 = vmatprep.subr.mxu0 0.0
        %608 = vmatpush2.msra.mxu0 0.0
        %609 = vmatprep.subr.mxu0 0.0
        %610 = vmatpush2.msra.mxu0 0.0
        %611 = vmatprep.subr.mxu0 0.0
        %612 = vmatpush2.msra.mxu0 0.0
        %613 = vmatprep.subr.mxu0 0.0
        %614 = vmatpush2.msra.mxu0 0.0
        %615 = vmatprep.subr.mxu0 0.0
        %616 = vmatpush2.msra.mxu0 0.0
        %617 = vmatprep.subr.mxu0 0.0
        %618 = vmatpush2.msra.mxu0 0.0
        %619 = vmatprep.subr.mxu0 0.0
        %620 = vmatpush2.msra.mxu0 0.0
        %621 = vmatprep.subr.mxu0 0.0
        %622 = vmatpush2.msra.mxu0 0.0
        %623 = vmatprep.subr.mxu0 0.0
        %624 = vmatpush2.msra.mxu0 0.0
        %625 = vmatprep.subr.mxu0 0.0
        %626 = vmatpush2.msra.mxu0 0.0
        %627 = vmatprep.subr.mxu0 0.0
        %628 = vmatpush2.msra.mxu0 0.0
        %629 = vmatprep.subr.mxu0 0.0
        %630 = vmatpush2.msra.mxu0 0.0
        %631 = vmatprep.mubr.f32.mxu0 0.0
        %v632 = vand.u32 %v240, 4294901760
        %633 = vmatmul.mubr.f32.gmra.mxu0 %v632
        %v634 = vpop.f32.mrf.mxu0
        %v635 = vadd.f32 %v556, %v634
        %v636 = vpop.f32.mrf.mxu0
        %637 = vmatprep.mubr.f32.mxu0 0.0
        %v638 = vand.u32 %v243, 4294901760
        %639 = vmatmul.mubr.f32.gmra.mxu0 %v638
        %v640 = vpop.f32.mrf.mxu0
        %v641 = vadd.f32 %v564, %v640
        %v642 = vpop.f32.mrf.mxu0
        %643 = vdwg.mxu0
        %644 = vmatprep.subr.mxu0 0.0
        %645 = vmatpush1.msra.mxu0 0.0
        %646 = vmatprep.subr.mxu0 0.0
        %647 = vmatpush1.msra.mxu0 0.0
        %648 = vmatprep.subr.mxu0 0.0
        %649 = vmatpush1.msra.mxu0 0.0
        %650 = vmatprep.subr.mxu0 0.0
        %651 = vmatpush1.msra.mxu0 0.0
        %652 = vmatprep.subr.mxu0 0.0
        %653 = vmatpush1.msra.mxu0 0.0
        %654 = vmatprep.subr.mxu0 0.0
        %655 = vmatpush1.msra.mxu0 0.0
        %656 = vmatprep.subr.mxu0 0.0
        %657 = vmatpush1.msra.mxu0 0.0
        %658 = vmatprep.subr.mxu0 0.0
        %659 = vmatpush1.msra.mxu0 0.0
        %660 = vmatprep.subr.mxu0 0.0
        %661 = vmatpush1.msra.mxu0 0.0
        %662 = vmatprep.subr.mxu0 0.0
        %663 = vmatpush1.msra.mxu0 0.0
        %664 = vmatprep.subr.mxu0 0.0
        %665 = vmatpush1.msra.mxu0 0.0
        %666 = vmatprep.subr.mxu0 0.0
        %667 = vmatpush1.msra.mxu0 0.0
        %668 = vmatprep.subr.mxu0 0.0
        %669 = vmatpush1.msra.mxu0 1.0
        %670 = vmatprep.subr.mxu0 0.0
        %671 = vmatpush1.msra.mxu0 1.0
        %672 = vmatprep.subr.mxu0 0.0
        %673 = vmatpush1.msra.mxu0 1.0
        %674 = vmatprep.subr.mxu0 0.0
        %675 = vmatpush1.msra.mxu0 1.0
        %676 = vmatprep.subr.mxu0 0.0
        %677 = vmatpush2.msra.mxu0 0.0
        %678 = vmatprep.subr.mxu0 0.0
        %679 = vmatpush2.msra.mxu0 0.0
        %680 = vmatprep.subr.mxu0 0.0
        %681 = vmatpush2.msra.mxu0 0.0
        %682 = vmatprep.subr.mxu0 0.0
        %683 = vmatpush2.msra.mxu0 0.0
        %684 = vmatprep.subr.mxu0 0.0
        %685 = vmatpush2.msra.mxu0 0.0
        %686 = vmatprep.subr.mxu0 0.0
        %687 = vmatpush2.msra.mxu0 0.0
        %688 = vmatprep.subr.mxu0 0.0
        %689 = vmatpush2.msra.mxu0 0.0
        %690 = vmatprep.subr.mxu0 0.0
        %691 = vmatpush2.msra.mxu0 0.0
        %692 = vmatprep.subr.mxu0 0.0
        %693 = vmatpush2.msra.mxu0 0.0
        %694 = vmatprep.subr.mxu0 0.0
        %695 = vmatpush2.msra.mxu0 0.0
        %696 = vmatprep.subr.mxu0 0.0
        %697 = vmatpush2.msra.mxu0 0.0
        %698 = vmatprep.subr.mxu0 0.0
        %699 = vmatpush2.msra.mxu0 0.0
        %700 = vmatprep.subr.mxu0 0.0
        %701 = vmatpush2.msra.mxu0 0.0
        %702 = vmatprep.subr.mxu0 0.0
        %703 = vmatpush2.msra.mxu0 0.0
        %704 = vmatprep.subr.mxu0 0.0
        %705 = vmatpush2.msra.mxu0 0.0
        %706 = vmatprep.subr.mxu0 0.0
        %707 = vmatpush2.msra.mxu0 0.0
        %708 = vmatprep.mubr.f32.mxu0 0.0
        %v709 = vand.u32 %v240, 4294901760
        %710 = vmatmul.mubr.f32.gmra.mxu0 %v709
        %v711 = vpop.f32.mrf.mxu0
        %v712 = vadd.f32 %v635, %v711
        %v713 = vpop.f32.mrf.mxu0
        %714 = vmatprep.mubr.f32.mxu0 0.0
        %v715 = vand.u32 %v243, 4294901760
        %716 = vmatmul.mubr.f32.gmra.mxu0 %v715
        %v717 = vpop.f32.mrf.mxu0
        %v718 = vadd.f32 %v641, %v717
        %v719 = vpop.f32.mrf.mxu0
        %720 = vdwg.mxu0
        %v721 = vmul.f32 %v712, 2.0
        %v722 = vmul.f32 %v718, 2.0
        %v723 = vmul.f32 %v721, 1.442695
        %v724 = vpow.pop %v723
        %v725 = vmul.f32 %v722, 1.442695
        %v726 = vpow.pop %v725
        %v727 = vld [vmem:[#allocation2] sm:$0xff]
        %vm728 = vcmask 7168
        %v729 = vsel %vm728, %v724, 0.0
        %v730 = vsel %vm728, %v726, 0.0
        %v731 = vadd.f32 %v729, %v730
        %v732 = vadd.f32 %v727, %v731
        %733 = vst.msk [vmem:[#allocation2] sm:$0xff] %vm728, %v732
        // Predicated region
        $region41: #{tpu_custom_call.1} parent=27 // pred_check
          %p734 = pneg %p225
        $region42: #{tpu_custom_call.1} parent=27 // pred_check_branch
          %736 = sbr.rel (%p734) target = $region44
        $region43: #{tpu_custom_call.1} parent=27 // pred_region
          %v737 = vld [vmem:[#allocation2] sm:$0xff]
          %738 = vst.msk [vmem:[%s224] sm:$0xff] %vm728, %v737
        $region44: #{tpu_custom_call.1} parent=27 // pred_fallthru
          _
        %p739 = scmp.lt.s32.totalorder %s23, 1
        %s740 = scalar_select %p739, %s23, 1
        %p741 = scmp.lt.s32.totalorder %s22, 0
        %s742 = scalar_select %p741, %s22, 0
        %s743 = sadd.s32 %s742, %s740
        %s744 = smul.addr %s743, 8
        %s745 = scalar_lea.vmem %s2, %s744
        // Predicated region
        $region45: #{tpu_custom_call.1} parent=27 // pred_check
          %p746 = pneg %p116
        $region46: #{tpu_custom_call.1} parent=27 // pred_check_branch
          %748 = sbr.rel (%p746) target = $region48
        $region47: #{tpu_custom_call.1} parent=27 // pred_region
          _
        $region48: #{tpu_custom_call.1} parent=27 // pred_fallthru
          _
      $region28: #{tpu_custom_call.1} parent=5 // pred_fallthru
        _
      %p749 = scmp.le.s32.totalorder 2, %s12
      // Predicated region
      $region49: #{tpu_custom_call.1} parent=5 // pred_check
        %p750 = pneg %p749
      $region50: #{tpu_custom_call.1} parent=5 // pred_check_branch
        %752 = sbr.rel (%p750) target = $region52
      $region51: #{tpu_custom_call.1} parent=5 // pred_region
        %s753 = ssub.s32 %s12, 2
        // Predicated region
        $region53: #{tpu_custom_call.1} parent=51 // pred_check
          %p754 = pneg %p122
        $region54: #{tpu_custom_call.1} parent=51 // pred_check_branch
          %756 = sbr.rel (%p754) target = $region56
        $region55: #{tpu_custom_call.1} parent=51 // pred_region
          %p757 = scmp.lt.s32.totalorder %s26, 1
          %s758 = scalar_select %p757, %s26, 1
          %p759 = scmp.lt.s32.totalorder %s25, 0
          %s760 = scalar_select %p759, %s25, 0
          %s761 = sadd.s32 %s760, %s758
          %s762 = smul.addr %s761, 8
          %s763 = scalar_lea.vmem %s2, %s762
        $region56: #{tpu_custom_call.1} parent=51 // pred_fallthru
          _
      $region52: #{tpu_custom_call.1} parent=5 // pred_fallthru
        _
    $region6: #{tpu_custom_call.1} parent=1 // loop_footer
      %s16 = sadd.s32 1, %s12
    $region7: #{tpu_custom_call.1} parent=1 // loop_footer_branch
      %11 = sbr.rel target = $region3
    $region8: #{tpu_custom_call.1} parent=1 // loop_exit
      _
    %764 = vsyncpa [#allocation4], 1
    %s765 = scalar_lea.sflag [#allocation4], 1
    %766 = vsyncpa %s765, 1
    %767 = vsyncpa [#allocation6], 1
    %s768 = scalar_lea.sflag [#allocation6], 1
    %769 = vsyncpa %s768, 1

</llo_original>
